<compile_context>
chip_gen: v6e
topology: v6e:2x2x1
jax: 0.10.0
libtpu: 0.0.40
codegen_flags: <defaults>
</compile_context>

<pallas_src>
import functools

import jax
import jax.numpy as jnp
from jax.experimental import pallas as pl
from jax.experimental.pallas import tpu as pltpu


def angle_loss_kernel(tadj_ref, cost_ref, cos_ref, loss_ref,
                      m_sc, l_sc, *,
                      gamma, num_classes, mask_cols):
    c = pl.program_id(1)
    nc = pl.num_programs(1)

    # ---- init accumulators at the first class tile -------------------------
    @pl.when(c == 0)
    def _():
        m_sc[...] = jnp.full_like(m_sc, -jnp.inf)   # running max
        l_sc[...] = jnp.zeros_like(l_sc)            # running sum of exp

    cos = cos_ref[...].astype(jnp.float32)          # (TB, TC) raw cos_theta
    TB, TC = cos.shape

    # ---- streaming log-sum-exp over raw cos_theta ---------------------------
    def lse_update(tile):
        m_prev = m_sc[...]
        m_new = jnp.maximum(m_prev, jnp.max(tile, axis=1, keepdims=True))
        l_sc[...] = l_sc[...] * jnp.exp(m_prev - m_new) + jnp.sum(
            jnp.exp(tile - m_new), axis=1, keepdims=True)
        m_sc[...] = m_new

    if mask_cols:
        # Only the last class tile is ragged: mask there, pay nothing elsewhere.
        @pl.when(c == nc - 1)
        def _():
            col = jax.lax.broadcasted_iota(jnp.int32, (TB, TC), 1) + c * TC
            lse_update(jnp.where(col < num_classes, cos, -jnp.inf))

        @pl.when(c != nc - 1)
        def _():
            lse_update(cos)
    else:
        lse_update(cos)

    # ---- finalize at the last class tile ------------------------------------
    @pl.when(c == nc - 1)
    def _():
        t_adj = tadj_ref[...].astype(jnp.float32)   # (TB, 1) adjusted target logit
        cos_t = cost_ref[...].astype(jnp.float32)   # (TB, 1) cos at target column
        m = m_sc[...]
        # The streamed sum used exp(cos_t) at the target column; swap it for
        # exp(t_adj) to get the log-sum-exp of the margin-adjusted logits.
        l_corr = l_sc[...] + jnp.exp(t_adj - m) - jnp.exp(cos_t - m)
        l_corr = jnp.maximum(l_corr, 1e-30)         # guard rounding cancellation
        lse = m + jnp.log(l_corr)
        logpt = t_adj - lse                         # (TB, 1)
        if gamma == 0.0:
            loss = -logpt                           # fast path: no exp / pow
        else:
            pt = jnp.clip(jnp.exp(logpt), 0.0, 1.0) # clamp so (1-pt)**gamma != NaN
            loss = -((1.0 - pt) ** gamma) * logpt
        loss_ref[...] = loss                        # per-row loss, one write/tile


def _vmem_limit_bytes(cos_tile_bytes):
    """Generation-aware scoped-VMEM limit (<= 3/4 of physical VMEM)."""
    try:
        cap = int(pltpu.get_tpu_info().vmem_capacity_bytes)
    except Exception:
        cap = 64 << 20  # assume the smallest (v7x per-TC) if the query fails
    # Budget: double-buffered cos tile + tile-sized exp temporaries + headroom.
    want = 5 * cos_tile_bytes + (8 << 20)
    return min(max(want, 32 << 20), (cap * 3) // 4, 96 << 20)


def angle_loss(cos_theta, phi_theta, target, gamma=0, it=1,
               lambda_min=5.0, lambda_max=1500.0,
               block_b=256, block_c=8192):
    """Pallas implementation of AngleLoss.forward((cos_theta, phi_theta), target)."""
    # Python-side module state (self.it, lamb schedule).
    lamb = max(lambda_min, lambda_max / (1.0 + 0.1 * it))
    scale = 1.0 / (1.0 + lamb)

    B, C = cos_theta.shape
    target2d = target.reshape(B, 1).astype(jnp.int32)
    # Per-row gathers: read only B elements each, so the kernel never streams
    # phi_theta (or a second copy of cos_theta) from HBM.
    # TODO(synk): confirm take_along_axis lowers to a gather HLO (not a one-hot
    # matmul) in the surrounding program; swap for an explicit gather if not.
    phi_t = jnp.take_along_axis(phi_theta, target2d, axis=1).astype(jnp.float32)
    cos_t = jnp.take_along_axis(cos_theta, target2d, axis=1).astype(jnp.float32)
    t_adj = cos_t + (phi_t - cos_t) * scale          # adjusted target logit (B,1)

    # Batch tile: multiple of 8 (or the full dim).  For B > 8 cap at
    # round_up(ceil(B/2), 8) so there are always >= 2 batch tiles and the
    # "parallel" batch axis shards across both v7x TensorCores.
    if B <= 8:
        TB = B
    else:
        half8 = (((B + 1) // 2 + 7) // 8) * 8
        TB = max(8, min(block_b, half8))
    TC = C if C <= block_c else block_c              # full dim or multiple of 128
    nb = pl.cdiv(B, TB)
    nc = pl.cdiv(C, TC)
    mask_cols = (C % TC) != 0                        # only last class tile is ragged

    kernel = functools.partial(
        angle_loss_kernel,
        gamma=float(gamma), num_classes=C, mask_cols=mask_cols)

    per_row = pl.pallas_call(
        kernel,
        out_shape=jax.ShapeDtypeStruct((B, 1), jnp.float32),
        grid_spec=pltpu.PrefetchScalarGridSpec(
            num_scalar_prefetch=0,
            grid=(nb, nc),                           # class (reduction) axis last
            in_specs=[
                pl.BlockSpec((TB, 1), lambda b, c: (b, 0)),   # adjusted target logit
                pl.BlockSpec((TB, 1), lambda b, c: (b, 0)),   # cos at target column
                pl.BlockSpec((TB, TC), lambda b, c: (b, c)),  # cos_theta tiles
            ],
            out_specs=pl.BlockSpec((TB, 1), lambda b, c: (b, 0)),
            scratch_shapes=[pltpu.VMEM((TB, 1), jnp.float32)] * 2,
        ),
        compiler_params=pltpu.CompilerParams(
            dimension_semantics=("parallel", "arbitrary"),
            vmem_limit_bytes=_vmem_limit_bytes(TB * TC * 4),
        ),
    )(t_adj, cos_t, cos_theta)

    # Final reduction of per-row losses (tiny) done in the wrapper.
    return jnp.sum(per_row) / B


def _angle_loss_ref(cos_theta, phi_theta, target, gamma=0, it=1,
                    lambda_min=5.0, lambda_max=1500.0):
    """Pure-JAX reference for correctness checking."""
    lamb = max(lambda_min, lambda_max / (1.0 + 0.1 * it))
    B, C = cos_theta.shape
    mask = jax.nn.one_hot(target, C, dtype=jnp.bool_)
    scale = 1.0 / (1.0 + lamb)
    output = cos_theta + jnp.where(mask, (phi_theta - cos_theta) * scale, 0.0)
    logp = jax.nn.log_softmax(output, axis=1)
    logpt = jnp.sum(jnp.where(mask, logp, 0.0), axis=1)
    pt = jnp.exp(logpt)
    loss = -((1.0 - pt) ** float(gamma)) * logpt
    return jnp.mean(loss)


if __name__ == "__main__":
    key = jax.random.PRNGKey(0)

    # Test 1: small shapes, single tile (batch=8, classes=16), gamma=0 path.
    B, C = 8, 16
    k1, k2, k3 = jax.random.split(key, 3)
    cos_theta = jax.random.normal(k1, (B, C), dtype=jnp.float32)
    phi_theta = jax.random.normal(k2, (B, C), dtype=jnp.float32)
    target = jax.random.randint(k3, (B,), 0, C, dtype=jnp.int32)

    loss = jax.block_until_ready(angle_loss(cos_theta, phi_theta, target, gamma=0, it=1))
    ref = _angle_loss_ref(cos_theta, phi_theta, target, gamma=0, it=1)
    assert jnp.allclose(loss, ref, rtol=1e-5, atol=1e-5), (loss, ref)

    # Test 2: exercise the tiled streaming-logsumexp + finalize-correction path
    # (3 batch tiles x 2 class tiles, ragged last class tile), gamma=2 path.
    B2, C2 = 24, 200
    k4, k5, k6 = jax.random.split(jax.random.PRNGKey(1), 3)
    cos2 = jax.random.normal(k4, (B2, C2), dtype=jnp.float32)
    phi2 = jax.random.normal(k5, (B2, C2), dtype=jnp.float32)
    tgt2 = jax.random.randint(k6, (B2,), 0, C2, dtype=jnp.int32)

    loss2 = jax.block_until_ready(
        angle_loss(cos2, phi2, tgt2, gamma=2, it=3, block_b=8, block_c=128))
    ref2 = _angle_loss_ref(cos2, phi2, tgt2, gamma=2, it=3)
    assert jnp.allclose(loss2, ref2, rtol=1e-5, atol=1e-5), (loss2, ref2)

    print("KERNEL_OK")
</pallas_src>

<mosaic_0001>
module attributes {stable_mosaic.version = 11 : i64} {
  func.func @angle_loss_kernel(%arg0: i32, %arg1: i32, %arg2: memref<8x1xf32, #tpu.memory_space<vmem>>, %arg3: memref<8x1xf32, #tpu.memory_space<vmem>>, %arg4: memref<8x16xf32, #tpu.memory_space<vmem>>, %arg5: memref<8x1xf32, #tpu.memory_space<vmem>>, %arg6: memref<8x1xf32, #tpu.memory_space<vmem>>, %arg7: memref<8x1xf32, #tpu.memory_space<vmem>>) attributes {dimension_semantics = [#tpu.dimension_semantics<parallel>, #tpu.dimension_semantics<arbitrary>], iteration_bounds = array<i64: 1, 1>, scalar_prefetch = 0 : i64, scratch_operands = 2 : i64, tpu.core_type = #tpu.core_type<tc>, window_params = [{transform_indices = @transform_0, window_bounds = array<i64: 8, 1>}, {transform_indices = @transform_1, window_bounds = array<i64: 8, 1>}, {transform_indices = @transform_2, window_bounds = array<i64: 8, 16>}, {transform_indices = @transform_3, window_bounds = array<i64: 8, 1>}]} {
    %c0_i32 = arith.constant 0 : i32
    %0 = arith.cmpi eq, %arg1, %c0_i32 : i32
    %1 = arith.extui %0 : i1 to i32
    %c0_i32_0 = arith.constant 0 : i32
    %2 = arith.cmpi ne, %1, %c0_i32_0 : i32
    scf.if %2 {
      %cst_13 = arith.constant 0xFF800000 : f32
      %23 = vector.broadcast %cst_13 : f32 to vector<8x1xf32>
      %c0_14 = arith.constant 0 : index
      %c0_15 = arith.constant 0 : index
      %24 = vector.load %arg6[%c0_14, %c0_15] : memref<8x1xf32, #tpu.memory_space<vmem>>, vector<8x1xf32>
      tpu.vector_store %arg6[%c0_14, %c0_15], %23 {strides = array<i32>} : memref<8x1xf32, #tpu.memory_space<vmem>>, vector<8x1xf32>,
      %cst_16 = arith.constant 0.000000e+00 : f32
      %25 = vector.broadcast %cst_16 : f32 to vector<8x1xf32>
      %c0_17 = arith.constant 0 : index
      %c0_18 = arith.constant 0 : index
      %26 = vector.load %arg7[%c0_17, %c0_18] : memref<8x1xf32, #tpu.memory_space<vmem>>, vector<8x1xf32>
      tpu.vector_store %arg7[%c0_17, %c0_18], %25 {strides = array<i32>} : memref<8x1xf32, #tpu.memory_space<vmem>>, vector<8x1xf32>,
    } else {
    }
    %c0 = arith.constant 0 : index
    %c0_1 = arith.constant 0 : index
    %3 = vector.load %arg4[%c0, %c0_1] : memref<8x16xf32, #tpu.memory_space<vmem>>, vector<8x16xf32>
    %c0_2 = arith.constant 0 : index
    %c0_3 = arith.constant 0 : index
    %4 = vector.load %arg6[%c0_2, %c0_3] : memref<8x1xf32, #tpu.memory_space<vmem>>, vector<8x1xf32>
    %cst = arith.constant dense<0xFF800000> : vector<8xf32>
    %5 = vector.multi_reduction <maximumf>, %3, %cst [1] : vector<8x16xf32> to vector<8xf32>
    %6 = vector.shape_cast %5 : vector<8xf32> to vector<8x1xf32>
    %7 = arith.maximumf %4, %6 : vector<8x1xf32>
    %c0_4 = arith.constant 0 : index
    %c0_5 = arith.constant 0 : index
    %8 = vector.load %arg7[%c0_4, %c0_5] : memref<8x1xf32, #tpu.memory_space<vmem>>, vector<8x1xf32>
    %9 = arith.subf %4, %7 : vector<8x1xf32>
    %10 = math.exp %9 : vector<8x1xf32>
    %11 = arith.mulf %8, %10 : vector<8x1xf32>
    %12 = vector.broadcast %7 : vector<8x1xf32> to vector<8x16xf32>
    %13 = arith.subf %3, %12 : vector<8x16xf32>
    %14 = math.exp %13 : vector<8x16xf32>
    %cst_6 = arith.constant dense<0.000000e+00> : vector<8xf32>
    %15 = vector.multi_reduction <add>, %14, %cst_6 [1] : vector<8x16xf32> to vector<8xf32>
    %16 = vector.shape_cast %15 : vector<8xf32> to vector<8x1xf32>
    %17 = arith.addf %11, %16 : vector<8x1xf32>
    %c0_7 = arith.constant 0 : index
    %c0_8 = arith.constant 0 : index
    %18 = vector.load %arg7[%c0_7, %c0_8] : memref<8x1xf32, #tpu.memory_space<vmem>>, vector<8x1xf32>
    tpu.vector_store %arg7[%c0_7, %c0_8], %17 {strides = array<i32>} : memref<8x1xf32, #tpu.memory_space<vmem>>, vector<8x1xf32>,
    %c0_9 = arith.constant 0 : index
    %c0_10 = arith.constant 0 : index
    %19 = vector.load %arg6[%c0_9, %c0_10] : memref<8x1xf32, #tpu.memory_space<vmem>>, vector<8x1xf32>
    tpu.vector_store %arg6[%c0_9, %c0_10], %7 {strides = array<i32>} : memref<8x1xf32, #tpu.memory_space<vmem>>, vector<8x1xf32>,
    %c0_i32_11 = arith.constant 0 : i32
    %20 = arith.cmpi eq, %arg1, %c0_i32_11 : i32
    %21 = arith.extui %20 : i1 to i32
    %c0_i32_12 = arith.constant 0 : i32
    %22 = arith.cmpi ne, %21, %c0_i32_12 : i32
    scf.if %22 {
      %c0_13 = arith.constant 0 : index
      %c0_14 = arith.constant 0 : index
      %23 = vector.load %arg2[%c0_13, %c0_14] : memref<8x1xf32, #tpu.memory_space<vmem>>, vector<8x1xf32>
      %c0_15 = arith.constant 0 : index
      %c0_16 = arith.constant 0 : index
      %24 = vector.load %arg3[%c0_15, %c0_16] : memref<8x1xf32, #tpu.memory_space<vmem>>, vector<8x1xf32>
      %c0_17 = arith.constant 0 : index
      %c0_18 = arith.constant 0 : index
      %25 = vector.load %arg6[%c0_17, %c0_18] : memref<8x1xf32, #tpu.memory_space<vmem>>, vector<8x1xf32>
      %c0_19 = arith.constant 0 : index
      %c0_20 = arith.constant 0 : index
      %26 = vector.load %arg7[%c0_19, %c0_20] : memref<8x1xf32, #tpu.memory_space<vmem>>, vector<8x1xf32>
      %27 = arith.subf %23, %25 : vector<8x1xf32>
      %28 = math.exp %27 : vector<8x1xf32>
      %29 = arith.addf %26, %28 : vector<8x1xf32>
      %30 = arith.subf %24, %25 : vector<8x1xf32>
      %31 = math.exp %30 : vector<8x1xf32>
      %32 = arith.subf %29, %31 : vector<8x1xf32>
      %cst_21 = arith.constant 1.000000e-30 : f32
      %33 = vector.broadcast %cst_21 : f32 to vector<8x1xf32>
      %34 = arith.maximumf %32, %33 : vector<8x1xf32>
      %35 = math.log %34 : vector<8x1xf32>
      %36 = arith.addf %25, %35 : vector<8x1xf32>
      %37 = arith.subf %23, %36 : vector<8x1xf32>
      %cst_22 = arith.constant 0.000000e+00 : f32
      %38 = vector.broadcast %cst_22 : f32 to vector<8x1xf32>
      %39 = arith.subf %38, %37 : vector<8x1xf32>
      %c0_23 = arith.constant 0 : index
      %c0_24 = arith.constant 0 : index
      %40 = vector.load %arg5[%c0_23, %c0_24] : memref<8x1xf32, #tpu.memory_space<vmem>>, vector<8x1xf32>
      tpu.vector_store %arg5[%c0_23, %c0_24], %39 {strides = array<i32>} : memref<8x1xf32, #tpu.memory_space<vmem>>, vector<8x1xf32>,
    } else {
    }
    return
  }
  func.func @transform_0(%arg0: i32, %arg1: i32) -> (i32, i32) {
    %c0_i32 = arith.constant 0 : i32
    %c0_i32_0 = arith.constant 0 : i32
    return %arg0, %c0_i32 : i32, i32
  }
  func.func @transform_1(%arg0: i32, %arg1: i32) -> (i32, i32) {
    %c0_i32 = arith.constant 0 : i32
    %c0_i32_0 = arith.constant 0 : i32
    return %arg0, %c0_i32 : i32, i32
  }
  func.func @transform_2(%arg0: i32, %arg1: i32) -> (i32, i32) {
    %c0_i32 = arith.constant 0 : i32
    return %arg0, %arg1 : i32, i32
  }
  func.func @transform_3(%arg0: i32, %arg1: i32) -> (i32, i32) {
    %c0_i32 = arith.constant 0 : i32
    %c0_i32_0 = arith.constant 0 : i32
    return %arg0, %c0_i32 : i32, i32
  }
}

</mosaic_0001>

<llo_original>
// kernel: tpu_custom_call.1
$region0: #{tpu_custom_call.1}
  #allocation0 [shape = 'u32[]', space=smem, size = 0x4, offset = 0x4, fixed_abs, tag = 'smem constant byte address 0x4 - core index']
  #allocation1 [shape = 'u32[144,128]{1,0:T(1,128)}', space=vmem, size = 0x12000, scoped, tag = 'internal scratch']
  #allocation2 [shape = 'f32[8,1]{1,0:T(8,128)}', space=vmem, size = 0x1000, scoped, tag = 'scratch operand']
  #allocation3 [shape = 'f32[8,1]{1,0:T(8,128)}', space=vmem, size = 0x1000, scoped, tag = 'scratch operand']
  %s0 = inlined_call_operand.vmem [shape: f32[8,1], index: 0, kind: input, shape index: {}]
  %s1 = inlined_call_operand.vmem [shape: f32[8,1], index: 1, kind: input, shape index: {}]
  %s2 = inlined_call_operand.vmem [shape: f32[8,16], index: 2, kind: input, shape index: {}]
  %s3 = inlined_call_operand.vmem [shape: f32[8,1], index: 3, kind: output, shape index: {}]
  %s4 = sld [smem:[#allocation0]]
  $region30: #{tpu_custom_call.1} parent=0
    _
  %s6 = ssub.s32 1, %s4
  %s7 = scalar_select 0, %s6, %s4
  // Predicated region
  $region2: #{tpu_custom_call.1} parent=0 // pred_check
    _
  $region3: #{tpu_custom_call.1} parent=0 // pred_check_branch
    %9 = sbr.rel (0) target = $region5
  $region4: #{tpu_custom_call.1} parent=0 // pred_region
    _
  $region5: #{tpu_custom_call.1} parent=0 // pred_fallthru
    _
  // Predicated region
  $region6: #{tpu_custom_call.1} parent=0 // pred_check
    _
  $region7: #{tpu_custom_call.1} parent=0 // pred_check_branch
    %11 = sbr.rel (0) target = $region9
  $region8: #{tpu_custom_call.1} parent=0 // pred_region
    _
  $region9: #{tpu_custom_call.1} parent=0 // pred_fallthru
    _
  // Predicated region
  $region10: #{tpu_custom_call.1} parent=0 // pred_check
    _
  $region11: #{tpu_custom_call.1} parent=0 // pred_check_branch
    %13 = sbr.rel (0) target = $region13
  $region12: #{tpu_custom_call.1} parent=0 // pred_region
    _
  $region13: #{tpu_custom_call.1} parent=0 // pred_fallthru
    _
  %p14 = scmp.eq.s32.totalorder 0, 0
  // Predicated region
  $region14: #{tpu_custom_call.1} parent=0 // pred_check
    %p15 = pneg %p14
  $region15: #{tpu_custom_call.1} parent=0 // pred_check_branch
    %17 = sbr.rel (%p15) target = $region17
  $region16: #{tpu_custom_call.1} parent=0 // pred_region
    %vm18 = vcmask 7168
    %19 = vst.msk [vmem:[#allocation2] sm:$0xff] %vm18, -inf
    %20 = vst.msk [vmem:[#allocation3] sm:$0xff] %vm18, 0.0
  $region17: #{tpu_custom_call.1} parent=0 // pred_fallthru
    _
  %v21 = vld [vmem:[%s2] sm:$0xff]
  %v22 = vld [vmem:[#allocation2] sm:$0xff]
  %vm23 = vcmask 130048
  %v24 = vsel %vm23, %v21, -inf
  %25 = vmax.xlane.f32.xlu0 %v24
  %v26 = vpop.xlane.xlu0 %25
  %v27 = vmax.f32 %v22, %v26
  %v28 = vld [vmem:[#allocation3] sm:$0xff]
  %v29 = vsub.f32 %v22, %v27
  %v30 = vmul.f32 %v29, 1.442695
  %v31 = vpow.pop %v30
  %v32 = vmul.f32 %v28, %v31
  %34 = vset.pattern.permute.xlu0 0
  %35 = vperm.xlu0 %34, %v27
  %v36 = vpop.permute.xlu0 %35
  %v38 = vsub.f32 %v21, %v36
  %v39 = vmul.f32 %v38, 1.442695
  %v40 = vpow.pop %v39
  %v41 = vsel %vm23, %v40, 0.0
  %42 = vadd.xlane.f32.xlu0 %v41
  %v43 = vpop.xlane.xlu0 %42
  %v44 = vadd.f32 %v32, %v43
  %vm45 = vcmask 7168
  %46 = vst.msk [vmem:[#allocation3] sm:$0xff] %vm45, %v44
  %47 = vst.msk [vmem:[#allocation2] sm:$0xff] %vm45, %v27
  // Predicated region
  $region18: #{tpu_custom_call.1} parent=0 // pred_check
    %p48 = pneg %p14
  $region19: #{tpu_custom_call.1} parent=0 // pred_check_branch
    %50 = sbr.rel (%p48) target = $region21
  $region20: #{tpu_custom_call.1} parent=0 // pred_region
    %v51 = vld [vmem:[%s0] sm:$0xff]
    %v52 = vld [vmem:[%s1] sm:$0xff]
    %v53 = vld [vmem:[#allocation2] sm:$0xff]
    %v54 = vld [vmem:[#allocation3] sm:$0xff]
    %v55 = vsub.f32 %v51, %v53
    %v56 = vmul.f32 %v55, 1.442695
    %v57 = vpow.pop %v56
    %v58 = vadd.f32 %v54, %v57
    %v59 = vsub.f32 %v52, %v53
    %v60 = vmul.f32 %v59, 1.442695
    %v61 = vpow.pop %v60
    %v62 = vsub.f32 %v58, %v61
    %v63 = vmax.f32 %v62, 1e-30
    %v64 = vlog2.pop %v63
    %v65 = vmul.f32 %v64, 0.6931472
    %v66 = vadd.f32 %v53, %v65
    %v67 = vsub.f32 %v51, %v66
    %v68 = vsub.f32 0.0, %v67
    %69 = vst.msk [vmem:[%s3] sm:$0xff] %vm45, %v68
  $region21: #{tpu_custom_call.1} parent=0 // pred_fallthru
    _
  // Predicated region
  $region22: #{tpu_custom_call.1} parent=0 // pred_check
    _
  $region23: #{tpu_custom_call.1} parent=0 // pred_check_branch
    %71 = sbr.rel (0) target = $region25
  $region24: #{tpu_custom_call.1} parent=0 // pred_region
    _
  $region25: #{tpu_custom_call.1} parent=0 // pred_fallthru
    _
  // Predicated region
  $region26: #{tpu_custom_call.1} parent=0 // pred_check
    _
  $region27: #{tpu_custom_call.1} parent=0 // pred_check_branch
    %73 = sbr.rel (0) target = $region29
  $region28: #{tpu_custom_call.1} parent=0 // pred_region
    _
  $region29: #{tpu_custom_call.1} parent=0 // pred_fallthru
    _

</llo_original>
